<compile_context>
chip_gen: v7x
topology: tpu7x:2x2x1
jax: 0.10.0
libtpu: 0.0.40
codegen_flags: <defaults>
</compile_context>

<pallas_src>
import jax
import jax.numpy as jnp
from jax.experimental import pallas as pl
from jax.experimental.pallas import tpu as pltpu

F_IN = 28 * 28          # 784
F_PAD = 896             # 7 * 128 (lane-aligned)
HID = 64
MAX_TB = 1024           # batch rows per grid step (sweepable 512-2048)


def _autoencoder_kernel(
    x_ref,                 # (TB, 896)  zero-padded flattened input tile
    w1_ref, b1_ref,        # (896, 64), (1, 64)
    w23_ref, b23_ref,      # (64, 64),  (1, 64)   fused encoder[2] @ decoder[0]
    w4_ref, b4_ref,        # (64, 896), (1, 896)
    out_ref,               # (TB, 896)  reconstruction tile (last 112 cols are padding)
):
    x = x_ref[...]
    h1 = jnp.dot(x, w1_ref[...], preferred_element_type=jnp.float32)
    h1 = jnp.maximum(h1 + b1_ref[...], 0.0)
    h2 = jnp.dot(h1, w23_ref[...], preferred_element_type=jnp.float32)
    h2 = jnp.maximum(h2 + b23_ref[...], 0.0)
    y = jnp.dot(h2, w4_ref[...], preferred_element_type=jnp.float32)
    out_ref[...] = (y + b4_ref[...]).astype(out_ref.dtype)


@jax.jit
def autoencoder_forward(x_nchw, params):
    """x_nchw: (B, 1, 28, 28) float32 -> (B, 784) float32 reconstruction."""
    B = x_nchw.shape[0]
    x_flat = x_nchw.reshape(B, -1)          # == x.view(B, -1) in the PyTorch module

    (w1, b1), (w2, b2), (w3, b3), (w4, b4) = params

    # Fuse the linear bottleneck (no activation between encoder[2] and decoder[0]).
    w23 = jnp.dot(w2, w3, preferred_element_type=jnp.float32)        # (64, 64)
    b23 = jnp.dot(b2, w3, preferred_element_type=jnp.float32) + b3   # (1, 64)

    # Zero-pad the feature dim to a multiple of 128 (numerically exact).
    pad_f = F_PAD - F_IN
    x_p = jnp.pad(x_flat, ((0, 0), (0, pad_f)))
    w1_p = jnp.pad(w1, ((0, pad_f), (0, 0)))
    w4_p = jnp.pad(w4, ((0, 0), (0, pad_f)))
    b4_p = jnp.pad(b4, ((0, 0), (0, pad_f)))

    # Batch tiling: single tile if small, else MAX_TB rows per grid step.
    if B <= MAX_TB:
        tb, b_pad = B, B
    else:
        tb = MAX_TB
        b_pad = pl.cdiv(B, tb) * tb
    if b_pad != B:
        x_p = jnp.pad(x_p, ((0, b_pad - B), (0, 0)))

    grid = (b_pad // tb,)

    def const(shape):
        # Weight/bias blocks: constant index map -> fetched once, VMEM-resident.
        return pl.BlockSpec(shape, lambda i: (0, 0))

    out = pl.pallas_call(
        _autoencoder_kernel,
        out_shape=jax.ShapeDtypeStruct((b_pad, F_PAD), jnp.float32),
        grid=grid,
        in_specs=[
            pl.BlockSpec((tb, F_PAD), lambda i: (i, 0)),   # x tile marches over batch
            const((F_PAD, HID)),                           # w1
            const((1, HID)),                               # b1
            const((HID, HID)),                             # w23
            const((1, HID)),                               # b23
            const((HID, F_PAD)),                           # w4
            const((1, F_PAD)),                             # b4
        ],
        out_specs=pl.BlockSpec((tb, F_PAD), lambda i: (i, 0)),
        compiler_params=pltpu.CompilerParams(
            dimension_semantics=("parallel",),             # batch tiles are independent
            vmem_limit_bytes=32 * 1024 * 1024,             # ~15 MiB used at TB=1024
        ),
    )(x_p, w1_p, b1, w23, b23, w4_p, b4_p)

    return out[:B, :F_IN]


def init_params(key):
    """Deterministic init mimicking torch.nn.Linear's U(-1/sqrt(fan_in), 1/sqrt(fan_in)).

    Weights stored transposed relative to PyTorch, i.e. (in, out). Biases (1, out).
    """
    def linear(key, fan_in, fan_out):
        kw, kb = jax.random.split(key)
        bound = 1.0 / jnp.sqrt(jnp.float32(fan_in))
        w = jax.random.uniform(kw, (fan_in, fan_out), jnp.float32, -bound, bound)
        b = jax.random.uniform(kb, (1, fan_out), jnp.float32, -bound, bound)
        return w, b

    k1, k2, k3, k4 = jax.random.split(key, 4)
    return (
        linear(k1, 28 * 28, 64),   # encoder[0]
        linear(k2, 64, 3),         # encoder[2]
        linear(k3, 3, 64),         # decoder[0]
        linear(k4, 64, 28 * 28),   # decoder[2]
    )


def _reference_forward(x_nchw, params):
    """Pure-JAX reference matching the original (unfused) module exactly."""
    B = x_nchw.shape[0]
    x = x_nchw.reshape(B, -1)
    (w1, b1), (w2, b2), (w3, b3), (w4, b4) = params
    h = jnp.maximum(x @ w1 + b1, 0.0)
    z = h @ w2 + b2
    h = jnp.maximum(z @ w3 + b3, 0.0)
    return h @ w4 + b4


if __name__ == "__main__":
    key = jax.random.PRNGKey(0)
    kx, kp = jax.random.split(key)

    # Small batch of 28x28 single-channel "images" (NCHW, as PyTorch would take).
    x = jax.random.normal(kx, (2, 1, 28, 28), dtype=jnp.float32)
    params = init_params(kp)

    out = autoencoder_forward(x, params)
    out = jax.block_until_ready(out)

    ref = _reference_forward(x, params)
    assert out.shape == (2, 28 * 28), out.shape
    # Tolerance covers fp-reassociation from the exact W23 = w2 @ w3 fusion.
    assert jnp.allclose(out, ref, atol=1e-3, rtol=1e-3), "mismatch vs reference"

    print("KERNEL_OK")
</pallas_src>

<mosaic_0001>
module attributes {stable_mosaic.version = 11 : i64} {
  func.func @_autoencoder_kernel(%arg0: i32, %arg1: memref<2x896xf32, #tpu.memory_space<vmem>>, %arg2: memref<896x64xf32, #tpu.memory_space<vmem>>, %arg3: memref<1x64xf32, #tpu.memory_space<vmem>>, %arg4: memref<64x64xf32, #tpu.memory_space<vmem>>, %arg5: memref<1x64xf32, #tpu.memory_space<vmem>>, %arg6: memref<64x896xf32, #tpu.memory_space<vmem>>, %arg7: memref<1x896xf32, #tpu.memory_space<vmem>>, %arg8: memref<2x896xf32, #tpu.memory_space<vmem>>) attributes {dimension_semantics = [#tpu.dimension_semantics<parallel>], iteration_bounds = array<i64: 1>, scalar_prefetch = 0 : i64, scratch_operands = 0 : i64, tpu.core_type = #tpu.core_type<tc>, window_params = [{transform_indices = @transform_0, window_bounds = array<i64: 2, 896>}, {pipeline_mode = #tpu.pipeline_mode<synchronous>, transform_indices = @transform_1, window_bounds = array<i64: 896, 64>}, {pipeline_mode = #tpu.pipeline_mode<synchronous>, transform_indices = @transform_2, window_bounds = array<i64: 1, 64>}, {pipeline_mode = #tpu.pipeline_mode<synchronous>, transform_indices = @transform_3, window_bounds = array<i64: 64, 64>}, {pipeline_mode = #tpu.pipeline_mode<synchronous>, transform_indices = @transform_4, window_bounds = array<i64: 1, 64>}, {pipeline_mode = #tpu.pipeline_mode<synchronous>, transform_indices = @transform_5, window_bounds = array<i64: 64, 896>}, {pipeline_mode = #tpu.pipeline_mode<synchronous>, transform_indices = @transform_6, window_bounds = array<i64: 1, 896>}, {transform_indices = @transform_7, window_bounds = array<i64: 2, 896>}]} {
    %c0 = arith.constant 0 : index
    %c0_0 = arith.constant 0 : index
    %0 = vector.load %arg1[%c0, %c0_0] : memref<2x896xf32, #tpu.memory_space<vmem>>, vector<2x896xf32>
    %c0_1 = arith.constant 0 : index
    %c0_2 = arith.constant 0 : index
    %1 = vector.load %arg2[%c0_1, %c0_2] : memref<896x64xf32, #tpu.memory_space<vmem>>, vector<896x64xf32>
    %cst = arith.constant dense<0.000000e+00> : vector<2x64xf32>
    %2 = tpu.matmul %0, %1, %cst {dimension_numbers = #tpu.dot_dimension_numbers<[1], [0], [0], [1], [0, 0, 1, 1], [], []>} : vector<2x896xf32>, vector<896x64xf32>, vector<2x64xf32> -> vector<2x64xf32>
    %c0_3 = arith.constant 0 : index
    %c0_4 = arith.constant 0 : index
    %3 = vector.load %arg3[%c0_3, %c0_4] : memref<1x64xf32, #tpu.memory_space<vmem>>, vector<1x64xf32>
    %4 = vector.broadcast %3 : vector<1x64xf32> to vector<2x64xf32>
    %5 = arith.addf %2, %4 : vector<2x64xf32>
    %cst_5 = arith.constant 0.000000e+00 : f32
    %6 = vector.broadcast %cst_5 : f32 to vector<2x64xf32>
    %7 = arith.maximumf %5, %6 : vector<2x64xf32>
    %c0_6 = arith.constant 0 : index
    %c0_7 = arith.constant 0 : index
    %8 = vector.load %arg4[%c0_6, %c0_7] : memref<64x64xf32, #tpu.memory_space<vmem>>, vector<64x64xf32>
    %cst_8 = arith.constant dense<0.000000e+00> : vector<2x64xf32>
    %9 = tpu.matmul %7, %8, %cst_8 {dimension_numbers = #tpu.dot_dimension_numbers<[1], [0], [0], [1], [0, 0, 1, 1], [], []>} : vector<2x64xf32>, vector<64x64xf32>, vector<2x64xf32> -> vector<2x64xf32>
    %c0_9 = arith.constant 0 : index
    %c0_10 = arith.constant 0 : index
    %10 = vector.load %arg5[%c0_9, %c0_10] : memref<1x64xf32, #tpu.memory_space<vmem>>, vector<1x64xf32>
    %11 = vector.broadcast %10 : vector<1x64xf32> to vector<2x64xf32>
    %12 = arith.addf %9, %11 : vector<2x64xf32>
    %cst_11 = arith.constant 0.000000e+00 : f32
    %13 = vector.broadcast %cst_11 : f32 to vector<2x64xf32>
    %14 = arith.maximumf %12, %13 : vector<2x64xf32>
    %c0_12 = arith.constant 0 : index
    %c0_13 = arith.constant 0 : index
    %15 = vector.load %arg6[%c0_12, %c0_13] : memref<64x896xf32, #tpu.memory_space<vmem>>, vector<64x896xf32>
    %cst_14 = arith.constant dense<0.000000e+00> : vector<2x896xf32>
    %16 = tpu.matmul %14, %15, %cst_14 {dimension_numbers = #tpu.dot_dimension_numbers<[1], [0], [0], [1], [0, 0, 1, 1], [], []>} : vector<2x64xf32>, vector<64x896xf32>, vector<2x896xf32> -> vector<2x896xf32>
    %c0_15 = arith.constant 0 : index
    %c0_16 = arith.constant 0 : index
    %17 = vector.load %arg7[%c0_15, %c0_16] : memref<1x896xf32, #tpu.memory_space<vmem>>, vector<1x896xf32>
    %18 = vector.broadcast %17 : vector<1x896xf32> to vector<2x896xf32>
    %19 = arith.addf %16, %18 : vector<2x896xf32>
    %c0_17 = arith.constant 0 : index
    %c0_18 = arith.constant 0 : index
    %20 = vector.load %arg8[%c0_17, %c0_18] : memref<2x896xf32, #tpu.memory_space<vmem>>, vector<2x896xf32>
    tpu.vector_store %arg8[%c0_17, %c0_18], %19 {strides = array<i32>} : memref<2x896xf32, #tpu.memory_space<vmem>>, vector<2x896xf32>,
    return
  }
  func.func @transform_0(%arg0: i32) -> (i32, i32) {
    %c0_i32 = arith.constant 0 : i32
    %c0_i32_0 = arith.constant 0 : i32
    return %arg0, %c0_i32 : i32, i32
  }
  func.func @transform_1(%arg0: i32) -> (i32, i32) {
    %c0_i32 = arith.constant 0 : i32
    %c0_i32_0 = arith.constant 0 : i32
    %c0_i32_1 = arith.constant 0 : i32
    return %c0_i32, %c0_i32_0 : i32, i32
  }
  func.func @transform_2(%arg0: i32) -> (i32, i32) {
    %c0_i32 = arith.constant 0 : i32
    %c0_i32_0 = arith.constant 0 : i32
    %c0_i32_1 = arith.constant 0 : i32
    return %c0_i32, %c0_i32_0 : i32, i32
  }
  func.func @transform_3(%arg0: i32) -> (i32, i32) {
    %c0_i32 = arith.constant 0 : i32
    %c0_i32_0 = arith.constant 0 : i32
    %c0_i32_1 = arith.constant 0 : i32
    return %c0_i32, %c0_i32_0 : i32, i32
  }
  func.func @transform_4(%arg0: i32) -> (i32, i32) {
    %c0_i32 = arith.constant 0 : i32
    %c0_i32_0 = arith.constant 0 : i32
    %c0_i32_1 = arith.constant 0 : i32
    return %c0_i32, %c0_i32_0 : i32, i32
  }
  func.func @transform_5(%arg0: i32) -> (i32, i32) {
    %c0_i32 = arith.constant 0 : i32
    %c0_i32_0 = arith.constant 0 : i32
    %c0_i32_1 = arith.constant 0 : i32
    return %c0_i32, %c0_i32_0 : i32, i32
  }
  func.func @transform_6(%arg0: i32) -> (i32, i32) {
    %c0_i32 = arith.constant 0 : i32
    %c0_i32_0 = arith.constant 0 : i32
    %c0_i32_1 = arith.constant 0 : i32
    return %c0_i32, %c0_i32_0 : i32, i32
  }
  func.func @transform_7(%arg0: i32) -> (i32, i32) {
    %c0_i32 = arith.constant 0 : i32
    %c0_i32_0 = arith.constant 0 : i32
    return %arg0, %c0_i32 : i32, i32
  }
}

</mosaic_0001>

<llo_original>
// kernel: autoencoder_forward.1
$region0: #{autoencoder_forward.1}
  #allocation0 [shape = 'u32[]', space=smem, size = 0x4, offset = 0x4, fixed_abs, tag = 'smem constant byte address 0x4 - core index']
  #allocation1 [shape = 'u32[144,128]{1,0:T(1,128)}', space=vmem, size = 0x12000, scoped, tag = 'internal scratch']
  %s0 = inlined_call_operand.vmem [shape: f32[2,896], index: 0, kind: input, shape index: {}]
  %s1 = inlined_call_operand.vmem [shape: f32[896,64], index: 1, kind: input, shape index: {}]
  %s2 = inlined_call_operand.vmem [shape: f32[1,64], index: 2, kind: input, shape index: {}]
  %s3 = inlined_call_operand.vmem [shape: f32[64,64], index: 3, kind: input, shape index: {}]
  %s4 = inlined_call_operand.vmem [shape: f32[1,64], index: 4, kind: input, shape index: {}]
  %s5 = inlined_call_operand.vmem [shape: f32[64,896], index: 5, kind: input, shape index: {}]
  %s6 = inlined_call_operand.vmem [shape: f32[1,896], index: 6, kind: input, shape index: {}]
  %s7 = inlined_call_operand.hbm [shape: f32[2,896], index: 7, kind: output, shape index: {}]
  %s8 = sld [smem:[#allocation0]]
  $region38: #{autoencoder_forward.1} parent=0
    _
  %s10 = ssub.s32 1, %s8
  %s11 = scalar_select 0, %s10, %s8
  $region1: #{autoencoder_forward.1} parent=0
    #allocation2 [shape = 'u8[7168]{0}', space=vmem, size = 0x1c00, scoped, tag = 'output window, operand 0, single buffered']
    #allocation3 [shape = 's32[1]{0}', space=sflag, size = 0x4, scoped, tag = 'scoped memory for autoencoder_forward.1']
    %12 = vsyncpa [#allocation3], 0
    // Predicated region
    $region2: #{autoencoder_forward.1} parent=1 // pred_check
      _
    $region3: #{autoencoder_forward.1} parent=1 // pred_check_branch
      %14 = sbr.rel (0) target = $region5
    $region4: #{autoencoder_forward.1} parent=1 // pred_region
      _
    $region5: #{autoencoder_forward.1} parent=1 // pred_fallthru
      _
    // Predicated region
    $region6: #{autoencoder_forward.1} parent=1 // pred_check
      _
    $region7: #{autoencoder_forward.1} parent=1 // pred_check_branch
      %16 = sbr.rel (0) target = $region9
    $region8: #{autoencoder_forward.1} parent=1 // pred_region
      _
    $region9: #{autoencoder_forward.1} parent=1 // pred_fallthru
      _
    // Predicated region
    $region10: #{autoencoder_forward.1} parent=1 // pred_check
      _
    $region11: #{autoencoder_forward.1} parent=1 // pred_check_branch
      %18 = sbr.rel (0) target = $region13
    $region12: #{autoencoder_forward.1} parent=1 // pred_region
      _
    $region13: #{autoencoder_forward.1} parent=1 // pred_fallthru
      _
    // Predicated region
    $region14: #{autoencoder_forward.1} parent=1 // pred_check
      _
    $region15: #{autoencoder_forward.1} parent=1 // pred_check_branch
      %20 = sbr.rel (0) target = $region17
    $region16: #{autoencoder_forward.1} parent=1 // pred_region
      _
    $region17: #{autoencoder_forward.1} parent=1 // pred_fallthru
      _
    // Predicated region
    $region18: #{autoencoder_forward.1} parent=1 // pred_check
      _
    $region19: #{autoencoder_forward.1} parent=1 // pred_check_branch
      %22 = sbr.rel (0) target = $region21
    $region20: #{autoencoder_forward.1} parent=1 // pred_region
      _
    $region21: #{autoencoder_forward.1} parent=1 // pred_fallthru
      _
    // Predicated region
    $region22: #{autoencoder_forward.1} parent=1 // pred_check
      _
    $region23: #{autoencoder_forward.1} parent=1 // pred_check_branch
      %24 = sbr.rel (0) target = $region25
    $region24: #{autoencoder_forward.1} parent=1 // pred_region
      _
    $region25: #{autoencoder_forward.1} parent=1 // pred_fallthru
      _
    // Predicated region
    $region26: #{autoencoder_forward.1} parent=1 // pred_check
      _
    $region27: #{autoencoder_forward.1} parent=1 // pred_check_branch
      %26 = sbr.rel (0) target = $region29
    $region28: #{autoencoder_forward.1} parent=1 // pred_region
      _
    $region29: #{autoencoder_forward.1} parent=1 // pred_fallthru
      _
    %v27 = vld [vmem:[%s0] sm:$0xff]
    %v28 = vld [vmem:[%s0 + $0x8] sm:$0x3f]
    %v29 = vld [vmem:[%s1] sm:$0xff]
    %v30 = vld [vmem:[%s1 + $0x8] sm:$0xff]
    %v31 = vld [vmem:[%s1 + $0x10] sm:$0xff]
    %v32 = vld [vmem:[%s1 + $0x18] sm:$0xff]
    %v33 = vld [vmem:[%s1 + $0x20] sm:$0xff]
    %v34 = vld [vmem:[%s1 + $0x28] sm:$0xff]
    %v35 = vld [vmem:[%s1 + $0x30] sm:$0xff]
    %v36 = vld [vmem:[%s1 + $0x38] sm:$0xff]
    %v37 = vld [vmem:[%s1 + $0x40] sm:$0xff]
    %v38 = vld [vmem:[%s1 + $0x48] sm:$0xff]
    %v39 = vld [vmem:[%s1 + $0x50] sm:$0xff]
    %v40 = vld [vmem:[%s1 + $0x58] sm:$0xff]
    %v41 = vld [vmem:[%s1 + $0x60] sm:$0xff]
    %v42 = vld [vmem:[%s1 + $0x68] sm:$0xff]
    %v43 = vld [vmem:[%s1 + $0x70] sm:$0xff]
    %v44 = vld [vmem:[%s1 + $0x78] sm:$0xff]
    %v45 = vld [vmem:[%s1 + $0x80] sm:$0xff]
    %v46 = vld [vmem:[%s1 + $0x88] sm:$0xff]
    %v47 = vld [vmem:[%s1 + $0x90] sm:$0xff]
    %v48 = vld [vmem:[%s1 + $0x98] sm:$0xff]
    %v49 = vld [vmem:[%s1 + $0xa0] sm:$0xff]
    %v50 = vld [vmem:[%s1 + $0xa8] sm:$0xff]
    %v51 = vld [vmem:[%s1 + $0xb0] sm:$0xff]
    %v52 = vld [vmem:[%s1 + $0xb8] sm:$0xff]
    %v53 = vld [vmem:[%s1 + $0xc0] sm:$0xff]
    %v54 = vld [vmem:[%s1 + $0xc8] sm:$0xff]
    %v55 = vld [vmem:[%s1 + $0xd0] sm:$0xff]
    %v56 = vld [vmem:[%s1 + $0xd8] sm:$0xff]
    %v57 = vld [vmem:[%s1 + $0xe0] sm:$0xff]
    %v58 = vld [vmem:[%s1 + $0xe8] sm:$0xff]
    %v59 = vld [vmem:[%s1 + $0xf0] sm:$0xff]
    %v60 = vld [vmem:[%s1 + $0xf8] sm:$0xff]
    %v61 = vld [vmem:[%s1 + $0x100] sm:$0xff]
    %v62 = vld [vmem:[%s1 + $0x108] sm:$0xff]
    %v63 = vld [vmem:[%s1 + $0x110] sm:$0xff]
    %v64 = vld [vmem:[%s1 + $0x118] sm:$0xff]
    %v65 = vld [vmem:[%s1 + $0x120] sm:$0xff]
    %v66 = vld [vmem:[%s1 + $0x128] sm:$0xff]
    %v67 = vld [vmem:[%s1 + $0x130] sm:$0xff]
    %v68 = vld [vmem:[%s1 + $0x138] sm:$0xff]
    %v69 = vld [vmem:[%s1 + $0x140] sm:$0xff]
    %v70 = vld [vmem:[%s1 + $0x148] sm:$0xff]
    %v71 = vld [vmem:[%s1 + $0x150] sm:$0xff]
    %v72 = vld [vmem:[%s1 + $0x158] sm:$0xff]
    %v73 = vld [vmem:[%s1 + $0x160] sm:$0xff]
    %v74 = vld [vmem:[%s1 + $0x168] sm:$0xff]
    %v75 = vld [vmem:[%s1 + $0x170] sm:$0xff]
    %v76 = vld [vmem:[%s1 + $0x178] sm:$0xff]
    %v77 = vld [vmem:[%s1 + $0x180] sm:$0xff]
    %v78 = vld [vmem:[%s1 + $0x188] sm:$0xff]
    %v79 = vld [vmem:[%s1 + $0x190] sm:$0xff]
    %v80 = vld [vmem:[%s1 + $0x198] sm:$0xff]
    %v81 = vld [vmem:[%s1 + $0x1a0] sm:$0xff]
    %v82 = vld [vmem:[%s1 + $0x1a8] sm:$0xff]
    %v83 = vld [vmem:[%s1 + $0x1b0] sm:$0xff]
    %v84 = vld [vmem:[%s1 + $0x1b8] sm:$0xff]
    %v85 = vld [vmem:[%s1 + $0x1c0] sm:$0xff]
    %v86 = vld [vmem:[%s1 + $0x1c8] sm:$0xff]
    %v87 = vld [vmem:[%s1 + $0x1d0] sm:$0xff]
    %v88 = vld [vmem:[%s1 + $0x1d8] sm:$0xff]
    %v89 = vld [vmem:[%s1 + $0x1e0] sm:$0xff]
    %v90 = vld [vmem:[%s1 + $0x1e8] sm:$0xff]
    %v91 = vld [vmem:[%s1 + $0x1f0] sm:$0xff]
    %v92 = vld [vmem:[%s1 + $0x1f8] sm:$0xff]
    %v93 = vld [vmem:[%s1 + $0x200] sm:$0xff]
    %v94 = vld [vmem:[%s1 + $0x208] sm:$0xff]
    %v95 = vld [vmem:[%s1 + $0x210] sm:$0xff]
    %v96 = vld [vmem:[%s1 + $0x218] sm:$0xff]
    %v97 = vld [vmem:[%s1 + $0x220] sm:$0xff]
    %v98 = vld [vmem:[%s1 + $0x228] sm:$0xff]
    %v99 = vld [vmem:[%s1 + $0x230] sm:$0xff]
    %v100 = vld [vmem:[%s1 + $0x238] sm:$0xff]
    %v101 = vld [vmem:[%s1 + $0x240] sm:$0xff]
    %v102 = vld [vmem:[%s1 + $0x248] sm:$0xff]
    %v103 = vld [vmem:[%s1 + $0x250] sm:$0xff]
    %v104 = vld [vmem:[%s1 + $0x258] sm:$0xff]
    %v105 = vld [vmem:[%s1 + $0x260] sm:$0xff]
    %v106 = vld [vmem:[%s1 + $0x268] sm:$0xff]
    %v107 = vld [vmem:[%s1 + $0x270] sm:$0xff]
    %v108 = vld [vmem:[%s1 + $0x278] sm:$0xff]
    %v109 = vld [vmem:[%s1 + $0x280] sm:$0xff]
    %v110 = vld [vmem:[%s1 + $0x288] sm:$0xff]
    %v111 = vld [vmem:[%s1 + $0x290] sm:$0xff]
    %v112 = vld [vmem:[%s1 + $0x298] sm:$0xff]
    %v113 = vld [vmem:[%s1 + $0x2a0] sm:$0xff]
    %v114 = vld [vmem:[%s1 + $0x2a8] sm:$0xff]
    %v115 = vld [vmem:[%s1 + $0x2b0] sm:$0xff]
    %v116 = vld [vmem:[%s1 + $0x2b8] sm:$0xff]
    %v117 = vld [vmem:[%s1 + $0x2c0] sm:$0xff]
    %v118 = vld [vmem:[%s1 + $0x2c8] sm:$0xff]
    %v119 = vld [vmem:[%s1 + $0x2d0] sm:$0xff]
    %v120 = vld [vmem:[%s1 + $0x2d8] sm:$0xff]
    %v121 = vld [vmem:[%s1 + $0x2e0] sm:$0xff]
    %v122 = vld [vmem:[%s1 + $0x2e8] sm:$0xff]
    %v123 = vld [vmem:[%s1 + $0x2f0] sm:$0xff]
    %v124 = vld [vmem:[%s1 + $0x2f8] sm:$0xff]
    %v125 = vld [vmem:[%s1 + $0x300] sm:$0xff]
    %v126 = vld [vmem:[%s1 + $0x308] sm:$0xff]
    %v127 = vld [vmem:[%s1 + $0x310] sm:$0xff]
    %v128 = vld [vmem:[%s1 + $0x318] sm:$0xff]
    %v129 = vld [vmem:[%s1 + $0x320] sm:$0xff]
    %v130 = vld [vmem:[%s1 + $0x328] sm:$0xff]
    %v131 = vld [vmem:[%s1 + $0x330] sm:$0xff]
    %v132 = vld [vmem:[%s1 + $0x338] sm:$0xff]
    %v133 = vld [vmem:[%s1 + $0x340] sm:$0xff]
    %v134 = vld [vmem:[%s1 + $0x348] sm:$0xff]
    %v135 = vld [vmem:[%s1 + $0x350] sm:$0xff]
    %v136 = vld [vmem:[%s1 + $0x358] sm:$0xff]
    %v137 = vld [vmem:[%s1 + $0x360] sm:$0xff]
    %v138 = vld [vmem:[%s1 + $0x368] sm:$0xff]
    %v139 = vld [vmem:[%s1 + $0x370] sm:$0xff]
    %v140 = vld [vmem:[%s1 + $0x378] sm:$0xff]
    %v141 = vld [vmem:[%s2] sm:$0x1]
    %v143 = vlaneseq
    %v144 = vshrl.u32 %v143, 7
    %v145 = vsub.s32 0, %v144
    %v146 = vrot.slane %v141, %v145
    %v150 = vcombine.high %v27, %v27
    %v152 = vunpack.c.l.s4 1983009808
    %v153 = vunpack.c.0.s8 %v152
    %v154 = vlaneseq
    %v155 = vshrl.u32 %v154, 7
    %v156 = vsub.s32 %v153, %v155
    %v157 = vrot.slane %v27, %v156
    %v159 = vunpack.c.l.s4 1983009808
    %v160 = vunpack.c.0.s8 %v159
    %v161 = vlaneseq
    %v162 = vshrl.u32 %v161, 7
    %v163 = vsub.s32 %v160, %v162
    %v164 = vrot.slane %v150, %v163
    %v165 = vcombine.high %v157, %v157
    %v166 = vcombine.high %v164, %v164
    %v167 = vcombine.high %v28, %v28
    %v169 = vunpack.c.l.s4 1983009808
    %v170 = vunpack.c.0.s8 %v169
    %v171 = vlaneseq
    %v172 = vshrl.u32 %v171, 7
    %v173 = vsub.s32 %v170, %v172
    %v174 = vrot.slane %v28, %v173
    %v176 = vunpack.c.l.s4 1983009808
    %v177 = vunpack.c.0.s8 %v176
    %v178 = vlaneseq
    %v179 = vshrl.u32 %v178, 7
    %v180 = vsub.s32 %v177, %v179
    %v181 = vrot.slane %v167, %v180
    %v182 = vcombine.high %v174, %v174
    %190 = vmatprep.subr.mxu0 0.0
    %191 = vmatpush1.msra.mxu0 %v29
    %192 = vmatprep.subr.mxu0 0.0
    %193 = vmatpush1.msra.mxu0 %v30
    %194 = vmatprep.subr.mxu0 0.0
    %195 = vmatpush1.msra.mxu0 %v31
    %196 = vmatprep.subr.mxu0 0.0
    %197 = vmatpush1.msra.mxu0 %v32
    %198 = vmatprep.subr.mxu0 0.0
    %199 = vmatpush1.msra.mxu0 %v33
    %200 = vmatprep.subr.mxu0 0.0
    %201 = vmatpush1.msra.mxu0 %v34
    %202 = vmatprep.subr.mxu0 0.0
    %203 = vmatpush1.msra.mxu0 %v35
    %204 = vmatprep.subr.mxu0 0.0
    %205 = vmatpush1.msra.mxu0 %v36
    %206 = vmatprep.subr.mxu0 0.0
    %207 = vmatpush1.msra.mxu0 %v37
    %208 = vmatprep.subr.mxu0 0.0
    %209 = vmatpush1.msra.mxu0 %v38
    %210 = vmatprep.subr.mxu0 0.0
    %211 = vmatpush1.msra.mxu0 %v39
    %212 = vmatprep.subr.mxu0 0.0
    %213 = vmatpush1.msra.mxu0 %v40
    %214 = vmatprep.subr.mxu0 0.0
    %215 = vmatpush1.msra.mxu0 %v41
    %216 = vmatprep.subr.mxu0 0.0
    %217 = vmatpush1.msra.mxu0 %v42
    %218 = vmatprep.subr.mxu0 0.0
    %219 = vmatpush1.msra.mxu0 %v43
    %220 = vmatprep.subr.mxu0 0.0
    %221 = vmatpush1.msra.mxu0 %v44
    %222 = vmatprep.subr.mxu0 0.0
    %223 = vmatpush1.msra.mxu0 %v45
    %224 = vmatprep.subr.mxu0 0.0
    %225 = vmatpush1.msra.mxu0 %v46
    %226 = vmatprep.subr.mxu0 0.0
    %227 = vmatpush1.msra.mxu0 %v47
    %228 = vmatprep.subr.mxu0 0.0
    %229 = vmatpush1.msra.mxu0 %v48
    %230 = vmatprep.subr.mxu0 0.0
    %231 = vmatpush1.msra.mxu0 %v49
    %232 = vmatprep.subr.mxu0 0.0
    %233 = vmatpush1.msra.mxu0 %v50
    %234 = vmatprep.subr.mxu0 0.0
    %235 = vmatpush1.msra.mxu0 %v51
    %236 = vmatprep.subr.mxu0 0.0
    %237 = vmatpush1.msra.mxu0 %v52
    %238 = vmatprep.subr.mxu0 0.0
    %239 = vmatpush1.msra.mxu0 %v53
    %240 = vmatprep.subr.mxu0 0.0
    %241 = vmatpush1.msra.mxu0 %v54
    %242 = vmatprep.subr.mxu0 0.0
    %243 = vmatpush1.msra.mxu0 %v55
    %244 = vmatprep.subr.mxu0 0.0
    %245 = vmatpush1.msra.mxu0 %v56
    %246 = vmatprep.subr.mxu0 0.0
    %247 = vmatpush1.msra.mxu0 %v57
    %248 = vmatprep.subr.mxu0 0.0
    %249 = vmatpush1.msra.mxu0 %v58
    %250 = vmatprep.subr.mxu0 0.0
    %251 = vmatpush1.msra.mxu0 %v59
    %252 = vmatprep.subr.mxu0 0.0
    %253 = vmatpush1.msra.mxu0 %v60
    %254 = vmatprep.mubr.f32.mxu0 %v165
    %255 = vmatmul.mubr.f32.gmra.mrb[0].mxu0 %v157
    %v256 = vpop.f32.mrb[0].mxu0
    %v257 = vadd.f32 %v146, %v256
    %v258 = vpop.f32.mrb[0].mxu0
    %259 = vdwg.mxu0
    %260 = vmatprep.subr.mxu0 0.0
    %261 = vmatpush1.msra.mxu0 %v61
    %262 = vmatprep.subr.mxu0 0.0
    %263 = vmatpush1.msra.mxu0 %v62
    %264 = vmatprep.subr.mxu0 0.0
    %265 = vmatpush1.msra.mxu0 %v63
    %266 = vmatprep.subr.mxu0 0.0
    %267 = vmatpush1.msra.mxu0 %v64
    %268 = vmatprep.subr.mxu0 0.0
    %269 = vmatpush1.msra.mxu0 %v65
    %270 = vmatprep.subr.mxu0 0.0
    %271 = vmatpush1.msra.mxu0 %v66
    %272 = vmatprep.subr.mxu0 0.0
    %273 = vmatpush1.msra.mxu0 %v67
    %274 = vmatprep.subr.mxu0 0.0
    %275 = vmatpush1.msra.mxu0 %v68
    %276 = vmatprep.subr.mxu0 0.0
    %277 = vmatpush1.msra.mxu0 %v69
    %278 = vmatprep.subr.mxu0 0.0
    %279 = vmatpush1.msra.mxu0 %v70
    %280 = vmatprep.subr.mxu0 0.0
    %281 = vmatpush1.msra.mxu0 %v71
    %282 = vmatprep.subr.mxu0 0.0
    %283 = vmatpush1.msra.mxu0 %v72
    %284 = vmatprep.subr.mxu0 0.0
    %285 = vmatpush1.msra.mxu0 %v73
    %286 = vmatprep.subr.mxu0 0.0
    %287 = vmatpush1.msra.mxu0 %v74
    %288 = vmatprep.subr.mxu0 0.0
    %289 = vmatpush1.msra.mxu0 %v75
    %290 = vmatprep.subr.mxu0 0.0
    %291 = vmatpush1.msra.mxu0 %v76
    %292 = vmatprep.subr.mxu0 0.0
    %293 = vmatpush1.msra.mxu0 %v77
    %294 = vmatprep.subr.mxu0 0.0
    %295 = vmatpush1.msra.mxu0 %v78
    %296 = vmatprep.subr.mxu0 0.0
    %297 = vmatpush1.msra.mxu0 %v79
    %298 = vmatprep.subr.mxu0 0.0
    %299 = vmatpush1.msra.mxu0 %v80
    %300 = vmatprep.subr.mxu0 0.0
    %301 = vmatpush1.msra.mxu0 %v81
    %302 = vmatprep.subr.mxu0 0.0
    %303 = vmatpush1.msra.mxu0 %v82
    %304 = vmatprep.subr.mxu0 0.0
    %305 = vmatpush1.msra.mxu0 %v83
    %306 = vmatprep.subr.mxu0 0.0
    %307 = vmatpush1.msra.mxu0 %v84
    %308 = vmatprep.subr.mxu0 0.0
    %309 = vmatpush1.msra.mxu0 %v85
    %310 = vmatprep.subr.mxu0 0.0
    %311 = vmatpush1.msra.mxu0 %v86
    %312 = vmatprep.subr.mxu0 0.0
    %313 = vmatpush1.msra.mxu0 %v87
    %314 = vmatprep.subr.mxu0 0.0
    %315 = vmatpush1.msra.mxu0 %v88
    %316 = vmatprep.subr.mxu0 0.0
    %317 = vmatpush1.msra.mxu0 %v89
    %318 = vmatprep.subr.mxu0 0.0
    %319 = vmatpush1.msra.mxu0 %v90
    %320 = vmatprep.subr.mxu0 0.0
    %321 = vmatpush1.msra.mxu0 %v91
    %322 = vmatprep.subr.mxu0 0.0
    %323 = vmatpush1.msra.mxu0 %v92
    %324 = vmatprep.mubr.f32.mxu0 %v166
    %325 = vmatmul.mubr.f32.gmra.mrb[0].mxu0 %v164
    %v326 = vpop.f32.mrb[0].mxu0
    %v327 = vadd.f32 %v257, %v326
    %v328 = vpop.f32.mrb[0].mxu0
    %329 = vdwg.mxu0
    %330 = vmatprep.subr.mxu0 0.0
    %331 = vmatpush1.msra.mxu0 %v93
    %332 = vmatprep.subr.mxu0 0.0
    %333 = vmatpush1.msra.mxu0 %v94
    %334 = vmatprep.subr.mxu0 0.0
    %335 = vmatpush1.msra.mxu0 %v95
    %336 = vmatprep.subr.mxu0 0.0
    %337 = vmatpush1.msra.mxu0 %v96
    %338 = vmatprep.subr.mxu0 0.0
    %339 = vmatpush1.msra.mxu0 %v97
    %340 = vmatprep.subr.mxu0 0.0
    %341 = vmatpush1.msra.mxu0 %v98
    %342 = vmatprep.subr.mxu0 0.0
    %343 = vmatpush1.msra.mxu0 %v99
    %344 = vmatprep.subr.mxu0 0.0
    %345 = vmatpush1.msra.mxu0 %v100
    %346 = vmatprep.subr.mxu0 0.0
    %347 = vmatpush1.msra.mxu0 %v101
    %348 = vmatprep.subr.mxu0 0.0
    %349 = vmatpush1.msra.mxu0 %v102
    %350 = vmatprep.subr.mxu0 0.0
    %351 = vmatpush1.msra.mxu0 %v103
    %352 = vmatprep.subr.mxu0 0.0
    %353 = vmatpush1.msra.mxu0 %v104
    %354 = vmatprep.subr.mxu0 0.0
    %355 = vmatpush1.msra.mxu0 %v105
    %356 = vmatprep.subr.mxu0 0.0
    %357 = vmatpush1.msra.mxu0 %v106
    %358 = vmatprep.subr.mxu0 0.0
    %359 = vmatpush1.msra.mxu0 %v107
    %360 = vmatprep.subr.mxu0 0.0
    %361 = vmatpush1.msra.mxu0 %v108
    %362 = vmatprep.subr.mxu0 0.0
    %363 = vmatpush1.msra.mxu0 %v109
    %364 = vmatprep.subr.mxu0 0.0
    %365 = vmatpush1.msra.mxu0 %v110
    %366 = vmatprep.subr.mxu0 0.0
    %367 = vmatpush1.msra.mxu0 %v111
    %368 = vmatprep.subr.mxu0 0.0
    %369 = vmatpush1.msra.mxu0 %v112
    %370 = vmatprep.subr.mxu0 0.0
    %371 = vmatpush1.msra.mxu0 %v113
    %372 = vmatprep.subr.mxu0 0.0
    %373 = vmatpush1.msra.mxu0 %v114
    %374 = vmatprep.subr.mxu0 0.0
    %375 = vmatpush1.msra.mxu0 %v115
    %376 = vmatprep.subr.mxu0 0.0
    %377 = vmatpush1.msra.mxu0 %v116
    %378 = vmatprep.subr.mxu0 0.0
    %379 = vmatpush1.msra.mxu0 %v117
    %380 = vmatprep.subr.mxu0 0.0
    %381 = vmatpush1.msra.mxu0 %v118
    %382 = vmatprep.subr.mxu0 0.0
    %383 = vmatpush1.msra.mxu0 %v119
    %384 = vmatprep.subr.mxu0 0.0
    %385 = vmatpush1.msra.mxu0 %v120
    %386 = vmatprep.subr.mxu0 0.0
    %387 = vmatpush1.msra.mxu0 %v121
    %388 = vmatprep.subr.mxu0 0.0
    %389 = vmatpush1.msra.mxu0 %v122
    %390 = vmatprep.subr.mxu0 0.0
    %391 = vmatpush1.msra.mxu0 %v123
    %392 = vmatprep.subr.mxu0 0.0
    %393 = vmatpush1.msra.mxu0 %v124
    %394 = vmatprep.mubr.f32.mxu0 %v182
    %395 = vmatmul.mubr.f32.gmra.mrb[0].mxu0 %v174
    %v396 = vpop.f32.mrb[0].mxu0
    %v397 = vadd.f32 %v327, %v396
    %v398 = vpop.f32.mrb[0].mxu0
    %399 = vdwg.mxu0
    %400 = vmatprep.subr.mxu0 0.0
    %401 = vmatpush1.msra.mxu0 %v125
    %402 = vmatprep.subr.mxu0 0.0
    %403 = vmatpush1.msra.mxu0 %v126
    %404 = vmatprep.subr.mxu0 0.0
    %405 = vmatpush1.msra.mxu0 %v127
    %406 = vmatprep.subr.mxu0 0.0
    %407 = vmatpush1.msra.mxu0 %v128
    %408 = vmatprep.subr.mxu0 0.0
    %409 = vmatpush1.msra.mxu0 %v129
    %410 = vmatprep.subr.mxu0 0.0
    %411 = vmatpush1.msra.mxu0 %v130
    %412 = vmatprep.subr.mxu0 0.0
    %413 = vmatpush1.msra.mxu0 %v131
    %414 = vmatprep.subr.mxu0 0.0
    %415 = vmatpush1.msra.mxu0 %v132
    %416 = vmatprep.subr.mxu0 0.0
    %417 = vmatpush1.msra.mxu0 %v133
    %418 = vmatprep.subr.mxu0 0.0
    %419 = vmatpush1.msra.mxu0 %v134
    %420 = vmatprep.subr.mxu0 0.0
    %421 = vmatpush1.msra.mxu0 %v135
    %422 = vmatprep.subr.mxu0 0.0
    %423 = vmatpush1.msra.mxu0 %v136
    %424 = vmatprep.subr.mxu0 0.0
    %425 = vmatpush1.msra.mxu0 %v137
    %426 = vmatprep.subr.mxu0 0.0
    %427 = vmatpush1.msra.mxu0 %v138
    %428 = vmatprep.subr.mxu0 0.0
    %429 = vmatpush1.msra.mxu0 %v139
    %430 = vmatprep.subr.mxu0 0.0
    %431 = vmatpush1.msra.mxu0 %v140
    %432 = vmatprep.subr.mxu0 0.0
    %433 = vmatpush1.msra.mxu0 0.0
    %434 = vmatprep.subr.mxu0 0.0
    %435 = vmatpush1.msra.mxu0 0.0
    %436 = vmatprep.subr.mxu0 0.0
    %437 = vmatpush1.msra.mxu0 0.0
    %438 = vmatprep.subr.mxu0 0.0
    %439 = vmatpush1.msra.mxu0 0.0
    %440 = vmatprep.subr.mxu0 0.0
    %441 = vmatpush1.msra.mxu0 0.0
    %442 = vmatprep.subr.mxu0 0.0
    %443 = vmatpush1.msra.mxu0 0.0
    %444 = vmatprep.subr.mxu0 0.0
    %445 = vmatpush1.msra.mxu0 0.0
    %446 = vmatprep.subr.mxu0 0.0
    %447 = vmatpush1.msra.mxu0 0.0
    %448 = vmatprep.subr.mxu0 0.0
    %449 = vmatpush1.msra.mxu0 0.0
    %450 = vmatprep.subr.mxu0 0.0
    %451 = vmatpush1.msra.mxu0 0.0
    %452 = vmatprep.subr.mxu0 0.0
    %453 = vmatpush1.msra.mxu0 0.0
    %454 = vmatprep.subr.mxu0 0.0
    %455 = vmatpush1.msra.mxu0 0.0
    %456 = vmatprep.subr.mxu0 0.0
    %457 = vmatpush1.msra.mxu0 0.0
    %458 = vmatprep.subr.mxu0 0.0
    %459 = vmatpush1.msra.mxu0 0.0
    %460 = vmatprep.subr.mxu0 0.0
    %461 = vmatpush1.msra.mxu0 0.0
    %462 = vmatprep.subr.mxu0 0.0
    %463 = vmatpush1.msra.mxu0 0.0
    %464 = vmatprep.mubr.f32.mxu0 0.0
    %465 = vmatmul.mubr.f32.gmra.mrb[0].mxu0 %v181
    %v466 = vpop.f32.mrb[0].mxu0
    %v467 = vadd.f32 %v397, %v466
    %v468 = vpop.f32.mrb[0].mxu0
    %469 = vdwg.mxu0
    %v470 = vmax.f32 %v467, 0.0
    %v471 = vld [vmem:[%s3] sm:$0xff]
    %v472 = vld [vmem:[%s3 + $0x8] sm:$0xff]
    %v473 = vld [vmem:[%s3 + $0x10] sm:$0xff]
    %v474 = vld [vmem:[%s3 + $0x18] sm:$0xff]
    %v475 = vld [vmem:[%s3 + $0x20] sm:$0xff]
    %v476 = vld [vmem:[%s3 + $0x28] sm:$0xff]
    %v477 = vld [vmem:[%s3 + $0x30] sm:$0xff]
    %v478 = vld [vmem:[%s3 + $0x38] sm:$0xff]
    %v479 = vld [vmem:[%s4] sm:$0x1]
    %v481 = vlaneseq
    %v482 = vshrl.u32 %v481, 7
    %v483 = vsub.s32 0, %v482
    %v484 = vrot.slane %v479, %v483
    %vm486 = vcmask 523264
    %v488 = vsel %vm486, %v470, 0
    %490 = vmatprep.subr.mxu0 0.0
    %491 = vmatpush1.msra.mxu0 %v471
    %492 = vmatprep.subr.mxu0 0.0
    %493 = vmatpush1.msra.mxu0 %v472
    %494 = vmatprep.subr.mxu0 0.0
    %495 = vmatpush1.msra.mxu0 %v473
    %496 = vmatprep.subr.mxu0 0.0
    %497 = vmatpush1.msra.mxu0 %v474
    %498 = vmatprep.subr.mxu0 0.0
    %499 = vmatpush1.msra.mxu0 %v475
    %500 = vmatprep.subr.mxu0 0.0
    %501 = vmatpush1.msra.mxu0 %v476
    %502 = vmatprep.subr.mxu0 0.0
    %503 = vmatpush1.msra.mxu0 %v477
    %504 = vmatprep.subr.mxu0 0.0
    %505 = vmatpush1.msra.mxu0 %v478
    %506 = vmatprep.subr.mxu0 0.0
    %507 = vmatpush1.msra.mxu0 0.0
    %508 = vmatprep.subr.mxu0 0.0
    %509 = vmatpush1.msra.mxu0 0.0
    %510 = vmatprep.subr.mxu0 0.0
    %511 = vmatpush1.msra.mxu0 0.0
    %512 = vmatprep.subr.mxu0 0.0
    %513 = vmatpush1.msra.mxu0 0.0
    %514 = vmatprep.subr.mxu0 0.0
    %515 = vmatpush1.msra.mxu0 0.0
    %516 = vmatprep.subr.mxu0 0.0
    %517 = vmatpush1.msra.mxu0 0.0
    %518 = vmatprep.subr.mxu0 0.0
    %519 = vmatpush1.msra.mxu0 0.0
    %520 = vmatprep.subr.mxu0 0.0
    %521 = vmatpush1.msra.mxu0 0.0
    %522 = vmatprep.subr.mxu0 0.0
    %523 = vmatpush1.msra.mxu0 0.0
    %524 = vmatprep.subr.mxu0 0.0
    %525 = vmatpush1.msra.mxu0 0.0
    %526 = vmatprep.subr.mxu0 0.0
    %527 = vmatpush1.msra.mxu0 0.0
    %528 = vmatprep.subr.mxu0 0.0
    %529 = vmatpush1.msra.mxu0 0.0
    %530 = vmatprep.subr.mxu0 0.0
    %531 = vmatpush1.msra.mxu0 0.0
    %532 = vmatprep.subr.mxu0 0.0
    %533 = vmatpush1.msra.mxu0 0.0
    %534 = vmatprep.subr.mxu0 0.0
    %535 = vmatpush1.msra.mxu0 0.0
    %536 = vmatprep.subr.mxu0 0.0
    %537 = vmatpush1.msra.mxu0 0.0
    %538 = vmatprep.subr.mxu0 0.0
    %539 = vmatpush1.msra.mxu0 0.0
    %540 = vmatprep.subr.mxu0 0.0
    %541 = vmatpush1.msra.mxu0 0.0
    %542 = vmatprep.subr.mxu0 0.0
    %543 = vmatpush1.msra.mxu0 0.0
    %544 = vmatprep.subr.mxu0 0.0
    %545 = vmatpush1.msra.mxu0 0.0
    %546 = vmatprep.subr.mxu0 0.0
    %547 = vmatpush1.msra.mxu0 0.0
    %548 = vmatprep.subr.mxu0 0.0
    %549 = vmatpush1.msra.mxu0 0.0
    %550 = vmatprep.subr.mxu0 0.0
    %551 = vmatpush1.msra.mxu0 0.0
    %552 = vmatprep.subr.mxu0 0.0
    %553 = vmatpush1.msra.mxu0 0.0
    %554 = vmatprep.mubr.f32.mxu0 0.0
    %555 = vmatmul.mubr.f32.gmra.mrb[0].mxu0 %v488
    %v556 = vpop.f32.mrb[0].mxu0
    %v557 = vadd.f32 %v484, %v556
    %v558 = vpop.f32.mrb[0].mxu0
    %559 = vdwg.mxu0
    %v560 = vmax.f32 %v557, 0.0
    %v561 = vld [vmem:[%s5] sm:$0xff]
    %v562 = vld [vmem:[%s5 + $0x8] sm:$0xff]
    %v563 = vld [vmem:[%s5 + $0x10] sm:$0xff]
    %v564 = vld [vmem:[%s5 + $0x18] sm:$0xff]
    %v565 = vld [vmem:[%s5 + $0x20] sm:$0xff]
    %v566 = vld [vmem:[%s5 + $0x28] sm:$0xff]
    %v567 = vld [vmem:[%s5 + $0x30] sm:$0xff]
    %v568 = vld [vmem:[%s5 + $0x38] sm:$0xff]
    %v569 = vld [vmem:[%s5 + $0x40] sm:$0xff]
    %v570 = vld [vmem:[%s5 + $0x48] sm:$0xff]
    %v571 = vld [vmem:[%s5 + $0x50] sm:$0xff]
    %v572 = vld [vmem:[%s5 + $0x58] sm:$0xff]
    %v573 = vld [vmem:[%s5 + $0x60] sm:$0xff]
    %v574 = vld [vmem:[%s5 + $0x68] sm:$0xff]
    %v575 = vld [vmem:[%s5 + $0x70] sm:$0xff]
    %v576 = vld [vmem:[%s5 + $0x78] sm:$0xff]
    %v577 = vld [vmem:[%s5 + $0x80] sm:$0xff]
    %v578 = vld [vmem:[%s5 + $0x88] sm:$0xff]
    %v579 = vld [vmem:[%s5 + $0x90] sm:$0xff]
    %v580 = vld [vmem:[%s5 + $0x98] sm:$0xff]
    %v581 = vld [vmem:[%s5 + $0xa0] sm:$0xff]
    %v582 = vld [vmem:[%s5 + $0xa8] sm:$0xff]
    %v583 = vld [vmem:[%s5 + $0xb0] sm:$0xff]
    %v584 = vld [vmem:[%s5 + $0xb8] sm:$0xff]
    %v585 = vld [vmem:[%s5 + $0xc0] sm:$0xff]
    %v586 = vld [vmem:[%s5 + $0xc8] sm:$0xff]
    %v587 = vld [vmem:[%s5 + $0xd0] sm:$0xff]
    %v588 = vld [vmem:[%s5 + $0xd8] sm:$0xff]
    %v589 = vld [vmem:[%s5 + $0xe0] sm:$0xff]
    %v590 = vld [vmem:[%s5 + $0xe8] sm:$0xff]
    %v591 = vld [vmem:[%s5 + $0xf0] sm:$0xff]
    %v592 = vld [vmem:[%s5 + $0xf8] sm:$0xff]
    %v593 = vld [vmem:[%s5 + $0x100] sm:$0xff]
    %v594 = vld [vmem:[%s5 + $0x108] sm:$0xff]
    %v595 = vld [vmem:[%s5 + $0x110] sm:$0xff]
    %v596 = vld [vmem:[%s5 + $0x118] sm:$0xff]
    %v597 = vld [vmem:[%s5 + $0x120] sm:$0xff]
    %v598 = vld [vmem:[%s5 + $0x128] sm:$0xff]
    %v599 = vld [vmem:[%s5 + $0x130] sm:$0xff]
    %v600 = vld [vmem:[%s5 + $0x138] sm:$0xff]
    %v601 = vld [vmem:[%s5 + $0x140] sm:$0xff]
    %v602 = vld [vmem:[%s5 + $0x148] sm:$0xff]
    %v603 = vld [vmem:[%s5 + $0x150] sm:$0xff]
    %v604 = vld [vmem:[%s5 + $0x158] sm:$0xff]
    %v605 = vld [vmem:[%s5 + $0x160] sm:$0xff]
    %v606 = vld [vmem:[%s5 + $0x168] sm:$0xff]
    %v607 = vld [vmem:[%s5 + $0x170] sm:$0xff]
    %v608 = vld [vmem:[%s5 + $0x178] sm:$0xff]
    %v609 = vld [vmem:[%s5 + $0x180] sm:$0xff]
    %v610 = vld [vmem:[%s5 + $0x188] sm:$0xff]
    %v611 = vld [vmem:[%s5 + $0x190] sm:$0xff]
    %v612 = vld [vmem:[%s5 + $0x198] sm:$0xff]
    %v613 = vld [vmem:[%s5 + $0x1a0] sm:$0xff]
    %v614 = vld [vmem:[%s5 + $0x1a8] sm:$0xff]
    %v615 = vld [vmem:[%s5 + $0x1b0] sm:$0xff]
    %v616 = vld [vmem:[%s5 + $0x1b8] sm:$0xff]
    %v617 = vld [vmem:[%s6] sm:$0xff]
    %v619 = vlaneseq
    %v620 = vshrl.u32 %v619, 7
    %v621 = vsub.s32 0, %v620
    %v622 = vrot.slane %v617, %v621
    %v623 = vlaneseq
    %v624 = vshrl.u32 %v623, 7
    %v625 = vsub.s32 1, %v624
    %v626 = vrot.slane %v617, %v625
    %v627 = vlaneseq
    %v628 = vshrl.u32 %v627, 7
    %v629 = vsub.s32 2, %v628
    %v630 = vrot.slane %v617, %v629
    %v631 = vlaneseq
    %v632 = vshrl.u32 %v631, 7
    %v633 = vsub.s32 3, %v632
    %v634 = vrot.slane %v617, %v633
    %v635 = vlaneseq
    %v636 = vshrl.u32 %v635, 7
    %v637 = vsub.s32 4, %v636
    %v638 = vrot.slane %v617, %v637
    %v639 = vlaneseq
    %v640 = vshrl.u32 %v639, 7
    %v641 = vsub.s32 5, %v640
    %v642 = vrot.slane %v617, %v641
    %v643 = vlaneseq
    %v644 = vshrl.u32 %v643, 7
    %v645 = vsub.s32 6, %v644
    %v646 = vrot.slane %v617, %v645
    %v655 = vsel %vm486, %v560, 0
    %657 = vmatprep.subr.mxu0 %v562
    %658 = vmatpush1.msra.mxu0 %v561
    %659 = vmatprep.subr.mxu0 %v569
    %660 = vmatpush1.msra.mxu0 %v568
    %661 = vmatprep.subr.mxu0 %v576
    %662 = vmatpush1.msra.mxu0 %v575
    %663 = vmatprep.subr.mxu0 %v583
    %664 = vmatpush1.msra.mxu0 %v582
    %665 = vmatprep.subr.mxu0 %v590
    %666 = vmatpush1.msra.mxu0 %v589
    %667 = vmatprep.subr.mxu0 %v597
    %668 = vmatpush1.msra.mxu0 %v596
    %669 = vmatprep.subr.mxu0 %v604
    %670 = vmatpush1.msra.mxu0 %v603
    %671 = vmatprep.subr.mxu0 %v611
    %672 = vmatpush1.msra.mxu0 %v610
    %673 = vmatprep.subr.mxu0 0.0
    %674 = vmatpush1.msra.mxu0 0.0
    %675 = vmatprep.subr.mxu0 0.0
    %676 = vmatpush1.msra.mxu0 0.0
    %677 = vmatprep.subr.mxu0 0.0
    %678 = vmatpush1.msra.mxu0 0.0
    %679 = vmatprep.subr.mxu0 0.0
    %680 = vmatpush1.msra.mxu0 0.0
    %681 = vmatprep.subr.mxu0 0.0
    %682 = vmatpush1.msra.mxu0 0.0
    %683 = vmatprep.subr.mxu0 0.0
    %684 = vmatpush1.msra.mxu0 0.0
    %685 = vmatprep.subr.mxu0 0.0
    %686 = vmatpush1.msra.mxu0 0.0
    %687 = vmatprep.subr.mxu0 0.0
    %688 = vmatpush1.msra.mxu0 0.0
    %689 = vmatprep.subr.mxu0 0.0
    %690 = vmatpush1.msra.mxu0 0.0
    %691 = vmatprep.subr.mxu0 0.0
    %692 = vmatpush1.msra.mxu0 0.0
    %693 = vmatprep.subr.mxu0 0.0
    %694 = vmatpush1.msra.mxu0 0.0
    %695 = vmatprep.subr.mxu0 0.0
    %696 = vmatpush1.msra.mxu0 0.0
    %697 = vmatprep.subr.mxu0 0.0
    %698 = vmatpush1.msra.mxu0 0.0
    %699 = vmatprep.subr.mxu0 0.0
    %700 = vmatpush1.msra.mxu0 0.0
    %701 = vmatprep.subr.mxu0 0.0
    %702 = vmatpush1.msra.mxu0 0.0
    %703 = vmatprep.subr.mxu0 0.0
    %704 = vmatpush1.msra.mxu0 0.0
    %705 = vmatprep.subr.mxu0 0.0
    %706 = vmatpush1.msra.mxu0 0.0
    %707 = vmatprep.subr.mxu0 0.0
    %708 = vmatpush1.msra.mxu0 0.0
    %709 = vmatprep.subr.mxu0 0.0
    %710 = vmatpush1.msra.mxu0 0.0
    %711 = vmatprep.subr.mxu0 0.0
    %712 = vmatpush1.msra.mxu0 0.0
    %713 = vmatprep.subr.mxu0 0.0
    %714 = vmatpush1.msra.mxu0 0.0
    %715 = vmatprep.subr.mxu0 0.0
    %716 = vmatpush1.msra.mxu0 0.0
    %717 = vmatprep.subr.mxu0 0.0
    %718 = vmatpush1.msra.mxu0 0.0
    %719 = vmatprep.subr.mxu0 0.0
    %720 = vmatpush1.msra.mxu0 0.0
    %721 = vmatprep.mubr.f32.mxu0 0.0
    %722 = vmatmul.mubr.f32.gmra.mrb[0].mxu0 %v655
    %v723 = vpop.f32.mrb[0].mxu0
    %v724 = vadd.f32 %v622, %v723
    %v725 = vpop.f32.mrb[0].mxu0
    %v726 = vadd.f32 %v626, %v725
    %727 = vdwg.mxu0
    %728 = vmatprep.subr.mxu0 %v564
    %729 = vmatpush1.msra.mxu0 %v563
    %730 = vmatprep.subr.mxu0 %v571
    %731 = vmatpush1.msra.mxu0 %v570
    %732 = vmatprep.subr.mxu0 %v578
    %733 = vmatpush1.msra.mxu0 %v577
    %734 = vmatprep.subr.mxu0 %v585
    %735 = vmatpush1.msra.mxu0 %v584
    %736 = vmatprep.subr.mxu0 %v592
    %737 = vmatpush1.msra.mxu0 %v591
    %738 = vmatprep.subr.mxu0 %v599
    %739 = vmatpush1.msra.mxu0 %v598
    %740 = vmatprep.subr.mxu0 %v606
    %741 = vmatpush1.msra.mxu0 %v605
    %742 = vmatprep.subr.mxu0 %v613
    %743 = vmatpush1.msra.mxu0 %v612
    %744 = vmatprep.subr.mxu0 0.0
    %745 = vmatpush1.msra.mxu0 0.0
    %746 = vmatprep.subr.mxu0 0.0
    %747 = vmatpush1.msra.mxu0 0.0
    %748 = vmatprep.subr.mxu0 0.0
    %749 = vmatpush1.msra.mxu0 0.0
    %750 = vmatprep.subr.mxu0 0.0
    %751 = vmatpush1.msra.mxu0 0.0
    %752 = vmatprep.subr.mxu0 0.0
    %753 = vmatpush1.msra.mxu0 0.0
    %754 = vmatprep.subr.mxu0 0.0
    %755 = vmatpush1.msra.mxu0 0.0
    %756 = vmatprep.subr.mxu0 0.0
    %757 = vmatpush1.msra.mxu0 0.0
    %758 = vmatprep.subr.mxu0 0.0
    %759 = vmatpush1.msra.mxu0 0.0
    %760 = vmatprep.subr.mxu0 0.0
    %761 = vmatpush1.msra.mxu0 0.0
    %762 = vmatprep.subr.mxu0 0.0
    %763 = vmatpush1.msra.mxu0 0.0
    %764 = vmatprep.subr.mxu0 0.0
    %765 = vmatpush1.msra.mxu0 0.0
    %766 = vmatprep.subr.mxu0 0.0
    %767 = vmatpush1.msra.mxu0 0.0
    %768 = vmatprep.subr.mxu0 0.0
    %769 = vmatpush1.msra.mxu0 0.0
    %770 = vmatprep.subr.mxu0 0.0
    %771 = vmatpush1.msra.mxu0 0.0
    %772 = vmatprep.subr.mxu0 0.0
    %773 = vmatpush1.msra.mxu0 0.0
    %774 = vmatprep.subr.mxu0 0.0
    %775 = vmatpush1.msra.mxu0 0.0
    %776 = vmatprep.subr.mxu0 0.0
    %777 = vmatpush1.msra.mxu0 0.0
    %778 = vmatprep.subr.mxu0 0.0
    %779 = vmatpush1.msra.mxu0 0.0
    %780 = vmatprep.subr.mxu0 0.0
    %781 = vmatpush1.msra.mxu0 0.0
    %782 = vmatprep.subr.mxu0 0.0
    %783 = vmatpush1.msra.mxu0 0.0
    %784 = vmatprep.subr.mxu0 0.0
    %785 = vmatpush1.msra.mxu0 0.0
    %786 = vmatprep.subr.mxu0 0.0
    %787 = vmatpush1.msra.mxu0 0.0
    %788 = vmatprep.subr.mxu0 0.0
    %789 = vmatpush1.msra.mxu0 0.0
    %790 = vmatprep.subr.mxu0 0.0
    %791 = vmatpush1.msra.mxu0 0.0
    %792 = vmatprep.mubr.f32.mxu0 0.0
    %793 = vmatmul.mubr.f32.gmra.mrb[0].mxu0 %v655
    %v794 = vpop.f32.mrb[0].mxu0
    %v795 = vadd.f32 %v630, %v794
    %v796 = vpop.f32.mrb[0].mxu0
    %v797 = vadd.f32 %v634, %v796
    %798 = vdwg.mxu0
    %799 = vmatprep.subr.mxu0 %v566
    %800 = vmatpush1.msra.mxu0 %v565
    %801 = vmatprep.subr.mxu0 %v573
    %802 = vmatpush1.msra.mxu0 %v572
    %803 = vmatprep.subr.mxu0 %v580
    %804 = vmatpush1.msra.mxu0 %v579
    %805 = vmatprep.subr.mxu0 %v587
    %806 = vmatpush1.msra.mxu0 %v586
    %807 = vmatprep.subr.mxu0 %v594
    %808 = vmatpush1.msra.mxu0 %v593
    %809 = vmatprep.subr.mxu0 %v601
    %810 = vmatpush1.msra.mxu0 %v600
    %811 = vmatprep.subr.mxu0 %v608
    %812 = vmatpush1.msra.mxu0 %v607
    %813 = vmatprep.subr.mxu0 %v615
    %814 = vmatpush1.msra.mxu0 %v614
    %815 = vmatprep.subr.mxu0 0.0
    %816 = vmatpush1.msra.mxu0 0.0
    %817 = vmatprep.subr.mxu0 0.0
    %818 = vmatpush1.msra.mxu0 0.0
    %819 = vmatprep.subr.mxu0 0.0
    %820 = vmatpush1.msra.mxu0 0.0
    %821 = vmatprep.subr.mxu0 0.0
    %822 = vmatpush1.msra.mxu0 0.0
    %823 = vmatprep.subr.mxu0 0.0
    %824 = vmatpush1.msra.mxu0 0.0
    %825 = vmatprep.subr.mxu0 0.0
    %826 = vmatpush1.msra.mxu0 0.0
    %827 = vmatprep.subr.mxu0 0.0
    %828 = vmatpush1.msra.mxu0 0.0
    %829 = vmatprep.subr.mxu0 0.0
    %830 = vmatpush1.msra.mxu0 0.0
    %831 = vmatprep.subr.mxu0 0.0
    %832 = vmatpush1.msra.mxu0 0.0
    %833 = vmatprep.subr.mxu0 0.0
    %834 = vmatpush1.msra.mxu0 0.0
    %835 = vmatprep.subr.mxu0 0.0
    %836 = vmatpush1.msra.mxu0 0.0
    %837 = vmatprep.subr.mxu0 0.0
    %838 = vmatpush1.msra.mxu0 0.0
    %839 = vmatprep.subr.mxu0 0.0
    %840 = vmatpush1.msra.mxu0 0.0
    %841 = vmatprep.subr.mxu0 0.0
    %842 = vmatpush1.msra.mxu0 0.0
    %843 = vmatprep.subr.mxu0 0.0
    %844 = vmatpush1.msra.mxu0 0.0
    %845 = vmatprep.subr.mxu0 0.0
    %846 = vmatpush1.msra.mxu0 0.0
    %847 = vmatprep.subr.mxu0 0.0
    %848 = vmatpush1.msra.mxu0 0.0
    %849 = vmatprep.subr.mxu0 0.0
    %850 = vmatpush1.msra.mxu0 0.0
    %851 = vmatprep.subr.mxu0 0.0
    %852 = vmatpush1.msra.mxu0 0.0
    %853 = vmatprep.subr.mxu0 0.0
    %854 = vmatpush1.msra.mxu0 0.0
    %855 = vmatprep.subr.mxu0 0.0
    %856 = vmatpush1.msra.mxu0 0.0
    %857 = vmatprep.subr.mxu0 0.0
    %858 = vmatpush1.msra.mxu0 0.0
    %859 = vmatprep.subr.mxu0 0.0
    %860 = vmatpush1.msra.mxu0 0.0
    %861 = vmatprep.subr.mxu0 0.0
    %862 = vmatpush1.msra.mxu0 0.0
    %863 = vmatprep.mubr.f32.mxu0 0.0
    %864 = vmatmul.mubr.f32.gmra.mrb[0].mxu0 %v655
    %v865 = vpop.f32.mrb[0].mxu0
    %v866 = vadd.f32 %v638, %v865
    %v867 = vpop.f32.mrb[0].mxu0
    %v868 = vadd.f32 %v642, %v867
    %869 = vdwg.mxu0
    %870 = vmatprep.subr.mxu0 0.0
    %871 = vmatpush1.msra.mxu0 %v567
    %872 = vmatprep.subr.mxu0 0.0
    %873 = vmatpush1.msra.mxu0 %v574
    %874 = vmatprep.subr.mxu0 0.0
    %875 = vmatpush1.msra.mxu0 %v581
    %876 = vmatprep.subr.mxu0 0.0
    %877 = vmatpush1.msra.mxu0 %v588
    %878 = vmatprep.subr.mxu0 0.0
    %879 = vmatpush1.msra.mxu0 %v595
    %880 = vmatprep.subr.mxu0 0.0
    %881 = vmatpush1.msra.mxu0 %v602
    %882 = vmatprep.subr.mxu0 0.0
    %883 = vmatpush1.msra.mxu0 %v609
    %884 = vmatprep.subr.mxu0 0.0
    %885 = vmatpush1.msra.mxu0 %v616
    %886 = vmatprep.subr.mxu0 0.0
    %887 = vmatpush1.msra.mxu0 0.0
    %888 = vmatprep.subr.mxu0 0.0
    %889 = vmatpush1.msra.mxu0 0.0
    %890 = vmatprep.subr.mxu0 0.0
    %891 = vmatpush1.msra.mxu0 0.0
    %892 = vmatprep.subr.mxu0 0.0
    %893 = vmatpush1.msra.mxu0 0.0
    %894 = vmatprep.subr.mxu0 0.0
    %895 = vmatpush1.msra.mxu0 0.0
    %896 = vmatprep.subr.mxu0 0.0
    %897 = vmatpush1.msra.mxu0 0.0
    %898 = vmatprep.subr.mxu0 0.0
    %899 = vmatpush1.msra.mxu0 0.0
    %900 = vmatprep.subr.mxu0 0.0
    %901 = vmatpush1.msra.mxu0 0.0
    %902 = vmatprep.subr.mxu0 0.0
    %903 = vmatpush1.msra.mxu0 0.0
    %904 = vmatprep.subr.mxu0 0.0
    %905 = vmatpush1.msra.mxu0 0.0
    %906 = vmatprep.subr.mxu0 0.0
    %907 = vmatpush1.msra.mxu0 0.0
    %908 = vmatprep.subr.mxu0 0.0
    %909 = vmatpush1.msra.mxu0 0.0
    %910 = vmatprep.subr.mxu0 0.0
    %911 = vmatpush1.msra.mxu0 0.0
    %912 = vmatprep.subr.mxu0 0.0
    %913 = vmatpush1.msra.mxu0 0.0
    %914 = vmatprep.subr.mxu0 0.0
    %915 = vmatpush1.msra.mxu0 0.0
    %916 = vmatprep.subr.mxu0 0.0
    %917 = vmatpush1.msra.mxu0 0.0
    %918 = vmatprep.subr.mxu0 0.0
    %919 = vmatpush1.msra.mxu0 0.0
    %920 = vmatprep.subr.mxu0 0.0
    %921 = vmatpush1.msra.mxu0 0.0
    %922 = vmatprep.subr.mxu0 0.0
    %923 = vmatpush1.msra.mxu0 0.0
    %924 = vmatprep.subr.mxu0 0.0
    %925 = vmatpush1.msra.mxu0 0.0
    %926 = vmatprep.subr.mxu0 0.0
    %927 = vmatpush1.msra.mxu0 0.0
    %928 = vmatprep.subr.mxu0 0.0
    %929 = vmatpush1.msra.mxu0 0.0
    %930 = vmatprep.subr.mxu0 0.0
    %931 = vmatpush1.msra.mxu0 0.0
    %932 = vmatprep.subr.mxu0 0.0
    %933 = vmatpush1.msra.mxu0 0.0
    %934 = vmatprep.mubr.f32.mxu0 0.0
    %935 = vmatmul.mubr.f32.gmra.mrb[0].mxu0 %v655
    %v936 = vpop.f32.mrb[0].mxu0
    %v937 = vadd.f32 %v646, %v936
    %v938 = vpop.f32.mrb[0].mxu0
    %939 = vdwg.mxu0
    %v947 = vcombine.low %v724, %v726
    %v948 = vcombine.low %v795, %v797
    %v950 = vunpack.c.l.s4 1983009808
    %v951 = vunpack.c.0.s8 %v950
    %v952 = vlaneseq
    %v953 = vshrl.u32 %v952, 7
    %v954 = vsub.s32 %v951, %v953
    %v955 = vrot.slane %v947, %v954
    %v957 = vunpack.c.l.s4 1983009808
    %v958 = vunpack.c.0.s8 %v957
    %v959 = vlaneseq
    %v960 = vshrl.u32 %v959, 7
    %v961 = vsub.s32 %v958, %v960
    %v962 = vrot.slane %v948, %v961
    %v963 = vcombine.low %v955, %v962
    %v964 = vcombine.low %v866, %v868
    %v966 = vunpack.c.l.s4 1983009808
    %v967 = vunpack.c.0.s8 %v966
    %v968 = vlaneseq
    %v969 = vshrl.u32 %v968, 7
    %v970 = vsub.s32 %v967, %v969
    %v971 = vrot.slane %v964, %v970
    %v973 = vunpack.c.l.s4 1983009808
    %v974 = vunpack.c.0.s8 %v973
    %v975 = vlaneseq
    %v976 = vshrl.u32 %v975, 7
    %v977 = vsub.s32 %v974, %v976
    %v978 = vrot.slane %v937, %v977
    %v979 = vcombine.low %v971, %v978
    %982 = vst [vmem:[#allocation2] sm:$0xff] %v963
    %983 = vst [vmem:[#allocation2 + $0x8] sm:$0x3f] %v979
    // Predicated region
    $region30: #{autoencoder_forward.1} parent=1 // pred_check
      _
    $region31: #{autoencoder_forward.1} parent=1 // pred_check_branch
      %985 = sbr.rel (0) target = $region33
    $region32: #{autoencoder_forward.1} parent=1 // pred_region
      %s987 = ssub.s32 224, 224
      %988 = vsyncadd [#allocation3], %s987
      %s990 = sshll.u32 [#allocation2], 4
      %s991 = int_to_ptr.vmem [resolvable:$true] %s990
      %993 = dma.vmem_to_hbm [thread:$0]  %s991, 224, %s7, [#allocation3]
    $region33: #{autoencoder_forward.1} parent=1 // pred_fallthru
      _
    // Predicated region
    $region34: #{autoencoder_forward.1} parent=1 // pred_check
      _
    $region35: #{autoencoder_forward.1} parent=1 // pred_check_branch
      %995 = sbr.rel (0) target = $region37
    $region36: #{autoencoder_forward.1} parent=1 // pred_region
      %996 = dma.done [#allocation3], 224
    $region37: #{autoencoder_forward.1} parent=1 // pred_fallthru
      _
    %997 = vsyncpa [#allocation3], 1

</llo_original>
